<compile_context>
chip_gen: v7x
topology: tpu7x:2x2x1
jax: 0.10.0
libtpu: 0.0.40
codegen_flags: <defaults>
</compile_context>

<pallas_src>
import math

import jax
import jax.numpy as jnp
from jax.experimental import pallas as pl
from jax.experimental.pallas import tpu as pltpu


_LANE = 128
_WIDEN_LANES = 8 * _LANE        # fold tiny dims up to ~1024 lanes
_MAX_TILE_ROWS = 16384          # soft cap; byte-based sizing is the real limit


def _round_up(a, m):
    return ((a + m - 1) // m) * m


def _round_down(a, m):
    return (a // m) * m


def _vmem_budget_bytes():
    """Per-generation scoped-VMEM limit + pipeline budget (2 in + 2 out bufs)."""
    cap = None
    try:
        cap = getattr(pltpu.get_tpu_info(), "vmem_capacity_bytes", None)
    except Exception:
        cap = None
    if not cap:
        cap = 64 * 1024 * 1024  # conservative fallback: v7x physical VMEM per TC
    limit = int(min(cap * 0.7, 96 * 1024 * 1024))   # ~45 MiB v7x, ~90 MiB v5e/v6e
    budget = int(limit * 0.75)                      # headroom for Mosaic scratch
    return limit, budget


def _layer_scale_kernel(x_ref, gamma_ref, o_ref):
    # x_ref: (TILE_ROWS, TILE_COLS) tile; gamma_ref: (1, TILE_COLS), VMEM-resident.
    # Keep compute in the input dtype (no f32 upcast) — kernel is HBM-bound.
    o_ref[...] = x_ref[...] * gamma_ref[...]


def _choose_tile_rows(rows2, tile_cols, itemsize, sublane, budget):
    if rows2 <= sublane:
        return rows2  # single tiny block (block dim == full array dim is legal)
    # 2 input + 2 output double-buffered tiles must fit the pipeline budget.
    by_vmem = budget // (4 * tile_cols * itemsize)
    tile = max(sublane, min(_MAX_TILE_ROWS, _round_down(by_vmem, sublane)))
    # Never collapse to one grid step: keep >= 2 row blocks so both v7x
    # TensorCores get work under dimension_semantics=("parallel", ...).
    tile = min(tile, _round_up(pl.cdiv(rows2, 2), sublane))
    tile = max(tile, sublane)
    # Prefer an even grid length so the 2-way core split is balanced.
    g = pl.cdiv(rows2, tile)
    if g > 1 and g % 2 == 1:
        alt = _round_up(pl.cdiv(rows2, g + 1), sublane)
        if alt >= sublane and pl.cdiv(rows2, alt) % 2 == 0:
            tile = alt
    return tile


def layer_scale(x, gamma):
    """y = x * gamma (gamma broadcast along the last axis of x)."""
    assert x.shape[-1] == gamma.shape[-1], "gamma must match x's last axis"
    dim = x.shape[-1]
    rows = 1
    for s in x.shape[:-1]:
        rows *= s

    gamma = gamma.astype(x.dtype)
    itemsize = jnp.dtype(x.dtype).itemsize
    sublane = max(8, 32 // itemsize)  # 8 f32 / 16 bf16 / 32 int8 (packed sublanes)

    # --- lane-dense fold: make the 2-D width a multiple of 128 lanes ----------
    k = _LANE // math.gcd(dim, _LANE)     # minimal fold so (k*dim) % 128 == 0
    pad_rows = (-rows) % k
    # Padding materializes one extra copy of x in the wrapper, so only skip the
    # fold (→ masked vst.msk stores) when the pad is a large fraction of a large
    # array. Realistic ViT shapes (rows = batch*seq, dim mult. of 64) never pad.
    if pad_rows and pad_rows * 8 > rows and rows * dim * itemsize > (1 << 20):
        k, pad_rows = 1, 0
    rows_p = rows + pad_rows
    if (k * dim) % _LANE == 0:
        # Widen further for tiny dims: fatter unmasked vst, fewer grid steps.
        while k * dim < _WIDEN_LANES and rows_p % (2 * k) == 0:
            k *= 2
    rows2 = rows_p // k
    width = k * dim

    x2d = x.reshape(rows, dim)
    if pad_rows:
        x2d = jnp.pad(x2d, ((0, pad_rows), (0, 0)))
    x2d = x2d.reshape(rows2, width)
    gamma2d = jnp.tile(gamma, k).reshape(1, width)
    # (Pre-broadcasting gamma to (sublane, width) was evaluated as neutral for an
    #  HBM-bound kernel; keep the (1, width) resident block.)

    # --- per-generation tile sizing --------------------------------------------
    vmem_limit, budget = _vmem_budget_bytes()

    # Column tiling is only a guard for extremely wide rows (where even a
    # sublane-height full-width tile would blow the scoped VMEM limit).
    tile_cols = width
    if 4 * sublane * width * itemsize > budget:
        tile_cols = max(_LANE, _round_down(budget // (4 * sublane * itemsize), _LANE))
    tile_rows = _choose_tile_rows(rows2, tile_cols, itemsize, sublane, budget)

    gr = pl.cdiv(rows2, tile_rows)   # ragged last block handled by Pallas
    gc = pl.cdiv(width, tile_cols)

    if gc == 1:
        grid = (gr,)
        in_specs = [
            pl.BlockSpec((tile_rows, width), lambda i: (i, 0)),
            pl.BlockSpec((1, width), lambda i: (0, 0)),   # gamma stays resident
        ]
        out_specs = pl.BlockSpec((tile_rows, width), lambda i: (i, 0))
        dim_sem = ("parallel",)
    else:
        grid = (gr, gc)
        in_specs = [
            pl.BlockSpec((tile_rows, tile_cols), lambda i, j: (i, j)),
            pl.BlockSpec((1, tile_cols), lambda i, j: (0, j)),
        ]
        out_specs = pl.BlockSpec((tile_rows, tile_cols), lambda i, j: (i, j))
        dim_sem = ("parallel", "parallel")

    out = pl.pallas_call(
        _layer_scale_kernel,
        out_shape=jax.ShapeDtypeStruct((rows2, width), x.dtype),
        grid=grid,
        in_specs=in_specs,
        out_specs=out_specs,
        compiler_params=pltpu.CompilerParams(
            dimension_semantics=dim_sem,
            vmem_limit_bytes=vmem_limit,
        ),
    )(x2d, gamma2d)

    out = out.reshape(rows_p, dim)
    if pad_rows:
        out = out[:rows]
    return out.reshape(x.shape)


if __name__ == "__main__":
    # Module config: dim = hidden size; init_values = 1e-5 (gamma init).
    batch, seq, dim = 2, 8, 32
    init_values = 1e-5

    key = jax.random.PRNGKey(0)
    x = jax.random.normal(key, (batch, seq, dim), dtype=jnp.float32)

    # Deterministic parameter init, matching nn.Parameter(init_values * ones(dim)).
    gamma = init_values * jnp.ones((dim,), dtype=jnp.float32)

    y = layer_scale(x, gamma)
    y = jax.block_until_ready(y)

    # Reference check against plain JAX broadcasting multiply.
    y_ref = x * gamma
    assert jnp.allclose(y, y_ref, atol=1e-6, rtol=1e-6)

    print("KERNEL_OK")
</pallas_src>

<mosaic_0001>
module attributes {stable_mosaic.version = 11 : i64} {
  func.func @_layer_scale_kernel(%arg0: i32, %arg1: memref<1x512xf32, #tpu.memory_space<vmem>>, %arg2: memref<1x512xf32, #tpu.memory_space<vmem>>, %arg3: memref<1x512xf32, #tpu.memory_space<vmem>>) attributes {dimension_semantics = [#tpu.dimension_semantics<parallel>], iteration_bounds = array<i64: 1>, scalar_prefetch = 0 : i64, scratch_operands = 0 : i64, tpu.core_type = #tpu.core_type<tc>, window_params = [{transform_indices = @transform_0, window_bounds = array<i64: 1, 512>}, {pipeline_mode = #tpu.pipeline_mode<synchronous>, transform_indices = @transform_1, window_bounds = array<i64: 1, 512>}, {transform_indices = @transform_2, window_bounds = array<i64: 1, 512>}]} {
    %c0 = arith.constant 0 : index
    %c0_0 = arith.constant 0 : index
    %0 = vector.load %arg1[%c0, %c0_0] : memref<1x512xf32, #tpu.memory_space<vmem>>, vector<1x512xf32>
    %c0_1 = arith.constant 0 : index
    %c0_2 = arith.constant 0 : index
    %1 = vector.load %arg2[%c0_1, %c0_2] : memref<1x512xf32, #tpu.memory_space<vmem>>, vector<1x512xf32>
    %2 = arith.mulf %0, %1 : vector<1x512xf32>
    %c0_3 = arith.constant 0 : index
    %c0_4 = arith.constant 0 : index
    %3 = vector.load %arg3[%c0_3, %c0_4] : memref<1x512xf32, #tpu.memory_space<vmem>>, vector<1x512xf32>
    tpu.vector_store %arg3[%c0_3, %c0_4], %2 {strides = array<i32>} : memref<1x512xf32, #tpu.memory_space<vmem>>, vector<1x512xf32>,
    return
  }
  func.func @transform_0(%arg0: i32) -> (i32, i32) {
    %c0_i32 = arith.constant 0 : i32
    %c0_i32_0 = arith.constant 0 : i32
    return %arg0, %c0_i32 : i32, i32
  }
  func.func @transform_1(%arg0: i32) -> (i32, i32) {
    %c0_i32 = arith.constant 0 : i32
    %c0_i32_0 = arith.constant 0 : i32
    %c0_i32_1 = arith.constant 0 : i32
    return %c0_i32, %c0_i32_0 : i32, i32
  }
  func.func @transform_2(%arg0: i32) -> (i32, i32) {
    %c0_i32 = arith.constant 0 : i32
    %c0_i32_0 = arith.constant 0 : i32
    return %arg0, %c0_i32 : i32, i32
  }
}

</mosaic_0001>

<llo_original>
// kernel: tpu_custom_call.1
$region0: #{tpu_custom_call.1}
  #allocation0 [shape = 'u32[]', space=smem, size = 0x4, offset = 0x4, fixed_abs, tag = 'smem constant byte address 0x4 - core index']
  #allocation1 [shape = 'u32[144,128]{1,0:T(1,128)}', space=vmem, size = 0x12000, scoped, tag = 'internal scratch']
  %s0 = inlined_call_operand.hbm [shape: f32[1,512], index: 0, kind: input, shape index: {}]
  %s1 = inlined_call_operand.hbm [shape: f32[1,512], index: 1, kind: input, shape index: {}]
  %s2 = inlined_call_operand.hbm [shape: f32[1,512], index: 2, kind: output, shape index: {}]
  %s3 = sld [smem:[#allocation0]]
  $region26: #{tpu_custom_call.1} parent=0
    _
  %s5 = ssub.s32 1, %s3
  %s6 = scalar_select 0, %s5, %s3
  $region1: #{tpu_custom_call.1} parent=0
    #allocation2 [shape = 'u8[2048]{0}', space=vmem, size = 0x800, scoped, tag = 'input window, operand 0, single buffered']
    #allocation3 [shape = 's32[1]{0}', space=sflag, size = 0x4, scoped, tag = 'scoped memory for tpu_custom_call.1']
    #allocation4 [shape = 's32[1]{0}', space=sflag, size = 0x4, scoped, tag = 'scoped memory for tpu_custom_call.1']
    #allocation5 [shape = 'u8[2048]{0}', space=vmem, size = 0x800, scoped, tag = 'input window, operand 1, single buffered']
    #allocation6 [shape = 's32[1]{0}', space=sflag, size = 0x4, scoped, tag = 'scoped memory for tpu_custom_call.1']
    #allocation7 [shape = 'u8[2048]{0}', space=vmem, size = 0x800, scoped, tag = 'output window, operand 0, single buffered']
    %7 = vsyncpa [#allocation3], 0
    %8 = vsyncpa [#allocation6], 0
    %9 = vsyncpa [#allocation4], 0
    // Predicated region
    $region2: #{tpu_custom_call.1} parent=1 // pred_check
      _
    $region3: #{tpu_custom_call.1} parent=1 // pred_check_branch
      %11 = sbr.rel (0) target = $region5
    $region4: #{tpu_custom_call.1} parent=1 // pred_region
      %s13 = ssub.s32 64, 64
      %14 = vsyncadd [#allocation3], %s13
      %s16 = sshll.u32 [#allocation2], 4
      %s17 = int_to_ptr.vmem [resolvable:$true] %s16
      %19 = dma.hbm_to_vmem [thread:$0]  %s0, 64, %s17, [#allocation3]
    $region5: #{tpu_custom_call.1} parent=1 // pred_fallthru
      _
    // Predicated region
    $region6: #{tpu_custom_call.1} parent=1 // pred_check
      _
    $region7: #{tpu_custom_call.1} parent=1 // pred_check_branch
      %21 = sbr.rel (0) target = $region9
    $region8: #{tpu_custom_call.1} parent=1 // pred_region
      %s23 = ssub.s32 64, 64
      %24 = vsyncadd [#allocation6], %s23
      %s26 = sshll.u32 [#allocation5], 4
      %s27 = int_to_ptr.vmem [resolvable:$true] %s26
      %29 = dma.hbm_to_vmem [thread:$0]  %s1, 64, %s27, [#allocation6]
    $region9: #{tpu_custom_call.1} parent=1 // pred_fallthru
      _
    // Predicated region
    $region10: #{tpu_custom_call.1} parent=1 // pred_check
      _
    $region11: #{tpu_custom_call.1} parent=1 // pred_check_branch
      %31 = sbr.rel (0) target = $region13
    $region12: #{tpu_custom_call.1} parent=1 // pred_region
      %32 = dma.done [#allocation3], 64
    $region13: #{tpu_custom_call.1} parent=1 // pred_fallthru
      _
    // Predicated region
    $region14: #{tpu_custom_call.1} parent=1 // pred_check
      _
    $region15: #{tpu_custom_call.1} parent=1 // pred_check_branch
      %34 = sbr.rel (0) target = $region17
    $region16: #{tpu_custom_call.1} parent=1 // pred_region
      %35 = dma.done [#allocation6], 64
    $region17: #{tpu_custom_call.1} parent=1 // pred_fallthru
      _
    %v36 = vld [vmem:[#allocation2] sm:$0xf]
    %v37 = vld [vmem:[#allocation5] sm:$0xf]
    %v38 = vmul.f32 %v36, %v37
    %v39 = vlaneseq
    %vm40 = vcmp.ge.s32.totalorder %v39, 0
    %vm41 = vcmp.lt.s32.totalorder %v39, 512
    %vm42 = vmand %vm40, %vm41
    %43 = vst.msk [vmem:[#allocation7] sm:$0xf] %vm42, %v38
    // Predicated region
    $region18: #{tpu_custom_call.1} parent=1 // pred_check
      _
    $region19: #{tpu_custom_call.1} parent=1 // pred_check_branch
      %45 = sbr.rel (0) target = $region21
    $region20: #{tpu_custom_call.1} parent=1 // pred_region
      %s47 = ssub.s32 64, 64
      %48 = vsyncadd [#allocation4], %s47
      %s50 = sshll.u32 [#allocation7], 4
      %s51 = int_to_ptr.vmem [resolvable:$true] %s50
      %53 = dma.vmem_to_hbm [thread:$0]  %s51, 64, %s2, [#allocation4]
    $region21: #{tpu_custom_call.1} parent=1 // pred_fallthru
      _
    // Predicated region
    $region22: #{tpu_custom_call.1} parent=1 // pred_check
      _
    $region23: #{tpu_custom_call.1} parent=1 // pred_check_branch
      %55 = sbr.rel (0) target = $region25
    $region24: #{tpu_custom_call.1} parent=1 // pred_region
      %56 = dma.done [#allocation4], 64
    $region25: #{tpu_custom_call.1} parent=1 // pred_fallthru
      _
    %57 = vsyncpa [#allocation3], 1
    %58 = vsyncpa [#allocation6], 1
    %59 = vsyncpa [#allocation4], 1

</llo_original>
